<compile_context>
chip_gen: v7x
topology: tpu7x:2x2x1
jax: 0.10.0
libtpu: 0.0.40
codegen_flags: <defaults>
</compile_context>

<pallas_src>
import jax
import jax.numpy as jnp
from jax.experimental import pallas as pl
from jax.experimental.pallas import tpu as pltpu


def _tpu_device_kind():
    try:
        return jax.devices()[0].device_kind.lower()
    except Exception:
        return ""


def _pick_batch_block(n, seq_len, *, max_lanes, min_steps, prefer_even_steps):
    """Pick the batch tile B_blk (a divisor of n); lane width W = B_blk*seq_len."""
    divisors = [d for d in range(1, n + 1) if n % d == 0]

    def score(d):
        w = d * seq_len
        steps = n // d
        return (
            (w % 128 == 0) or (d == n),               # lane-dense block or full array
            (steps >= min_steps) or (n < min_steps),  # enough steps for all TCs
            w <= max_lanes,                           # bounded per-step VMEM / DMA
            (steps % 2 == 0) or (not prefer_even_steps) or (n < 2),
            w if w <= max_lanes else -w,              # widest under cap, else smallest
        )

    return max(divisors, key=score)


def make_word_cnn(word_embed_size, seq_len, kernel_size=5, num_filter=16,
                  compute_dtype=jnp.float32):
    C_in, C_out, K, L = word_embed_size, num_filter, kernel_size, seq_len
    pad = K // 2                                      # "same" padding (2 for K=5)

    kind = _tpu_device_kind()
    is_v7 = "v7" in kind
    if is_v7:
        # 64 MiB physical VMEM, 2 TensorCores: smaller cap, even step split.
        max_lanes, min_steps, prefer_even, vmem_cap = 16384, 2, True, 48 << 20
    else:
        # v5e / v6e: 1 TensorCore, 128 MiB VMEM: one big step is fine.
        max_lanes, min_steps, prefer_even, vmem_cap = 32768, 1, False, 100 << 20

    in_item = jnp.dtype(compute_dtype).itemsize
    out_dtype = compute_dtype                         # bf16 path emits bf16 output
    out_item = jnp.dtype(out_dtype).itemsize

    def conv_relu_flat(x_flat, w_stacked, b_col, n):
        """x_flat: (C_in, n*L) channels-major-flat slab -> (C_out, n*L)."""
        B_blk = _pick_batch_block(n, L, max_lanes=max_lanes, min_steps=min_steps,
                                  prefer_even_steps=prefer_even)
        W = B_blk * L
        steps = n // B_blk

        # Per-step VMEM: double-buffered in/out blocks + f32 epilogue intermediates
        # (tap bands + accumulator).  Give the compiler headroom, clamp to chip cap.
        per_lane = (2 * C_in * in_item + 2 * C_out * out_item
                    + (K * C_out + 2 * C_out) * 4)
        vmem_limit = max(32 << 20, int(1.5 * per_lane * W) + (2 << 20))
        vmem_limit = min(vmem_limit, vmem_cap)

        def kernel(x_ref, w_ref, b_ref, o_ref):
            # x_ref: (C_in, W)         unshifted input slab (compute dtype)
            # w_ref: (K*C_out, C_in)   tap-stacked conv weights
            # b_ref: (C_out, 1) f32    bias
            # o_ref: (C_out, W)        output slab
            # ONE MXU contraction covering all K taps (f32 accumulation).
            y = jnp.dot(w_ref[...], x_ref[...],
                        preferred_element_type=jnp.float32)        # (K*C_out, W)

            # In-kernel per-tap validity mask source: position inside own sequence.
            t = jax.lax.broadcasted_iota(jnp.int32, (1, W), 1) % L

            acc = y[pad * C_out:(pad + 1) * C_out, :]   # center tap: no roll / mask
            for k in range(K):                          # static unroll over taps
                if k == pad:
                    continue
                dk = k - pad
                band = y[k * C_out:(k + 1) * C_out, :]
                # out[:, j] += band[:, j + dk]  -> circular roll by (pad - k);
                # wrapped / cross-sequence lanes are exactly where the mask is 0.
                rolled = pltpu.roll(band, (pad - k) % W, axis=1)    # XLU (free slot)
                valid = jnp.logical_and(t + dk >= 0, t + dk < L)    # (1, W)
                acc = acc + jnp.where(valid, rolled, 0.0)

            o_ref[...] = jnp.maximum(acc + b_ref[...], 0.0).astype(o_ref.dtype)

        return pl.pallas_call(
            kernel,
            out_shape=jax.ShapeDtypeStruct((C_out, n * L), out_dtype),
            grid_spec=pltpu.PrefetchScalarGridSpec(
                num_scalar_prefetch=0,
                grid=(steps,),
                in_specs=[
                    pl.BlockSpec((C_in, W), lambda i: (0, i)),
                    pl.BlockSpec((K * C_out, C_in), lambda i: (0, 0)),
                    pl.BlockSpec((C_out, 1), lambda i: (0, 0)),
                ],
                out_specs=pl.BlockSpec((C_out, W), lambda i: (0, i)),
            ),
            compiler_params=pltpu.CompilerParams(
                dimension_semantics=("parallel",),
                vmem_limit_bytes=vmem_limit),
        )(x_flat, w_stacked, b_col)

    def forward(x, w, b):
        # x: (N, C_in, L)   w: (C_out, C_in, K)   b: (C_out,)   (PyTorch layouts)
        N = x.shape[0]
        # TODO(synk): for multi-layer use, keep activations in the (C, N*L)
        # channels-major-flat layout and call conv_relu_flat directly — the
        # transposes below are full extra HBM passes for a mem-bound conv.
        x_flat = (jnp.transpose(x, (1, 0, 2))             # (C_in, N, L)
                  .reshape(C_in, N * L)
                  .astype(compute_dtype))
        w_stacked = (jnp.transpose(w, (2, 0, 1))          # (K, C_out, C_in)
                     .reshape(K * C_out, C_in)
                     .astype(compute_dtype))
        b_col = b.reshape(C_out, 1).astype(jnp.float32)

        out2d = conv_relu_flat(x_flat, w_stacked, b_col, N)
        return jnp.transpose(out2d.reshape(C_out, N, L), (1, 0, 2))

    return forward


if __name__ == "__main__":
    # Small shapes consistent with the module's forward (batch, embed, seq).
    N, C_in, L = 8, 32, 32
    C_out, K = 16, 5

    key = jax.random.PRNGKey(0)
    kx, kw, kb = jax.random.split(key, 3)
    x = jax.random.normal(kx, (N, C_in, L), dtype=jnp.float32)
    bound = 1.0 / (C_in * K) ** 0.5                    # PyTorch-style fan-in bound
    w = jax.random.uniform(kw, (C_out, C_in, K), jnp.float32, -bound, bound)
    b = jax.random.uniform(kb, (C_out,), jnp.float32, -bound, bound)

    def conv_relu_ref(xx, ww):
        y = jax.lax.conv_general_dilated(
            xx, ww, window_strides=(1,), padding=[(K // 2, K // 2)],
            dimension_numbers=("NCW", "OIW", "NCW"),
            precision=jax.lax.Precision.HIGHEST)
        return jnp.maximum(y + b.reshape(1, C_out, 1), 0.0)

    # --- f32 compute path (nn.Conv1d + ReLU semantics) ----------------------
    ref = conv_relu_ref(x, w)
    word_cnn = make_word_cnn(C_in, L, K, C_out, compute_dtype=jnp.float32)
    out = jax.block_until_ready(word_cnn(x, w, b))
    assert out.shape == (N, C_out, L)
    assert jnp.allclose(out, ref, atol=1e-4, rtol=1e-4)

    # --- bf16 storage/MXU path (f32 accumulation + f32 epilogue, bf16 output) -
    ref_q = conv_relu_ref(x.astype(jnp.bfloat16).astype(jnp.float32),
                          w.astype(jnp.bfloat16).astype(jnp.float32))
    word_cnn_bf16 = make_word_cnn(C_in, L, K, C_out, compute_dtype=jnp.bfloat16)
    out_bf16 = jax.block_until_ready(word_cnn_bf16(x, w, b))
    assert out_bf16.shape == (N, C_out, L)
    assert out_bf16.dtype == jnp.bfloat16
    assert jnp.allclose(out_bf16.astype(jnp.float32), ref_q, atol=2e-2, rtol=2e-2)

    print("KERNEL_OK")
</pallas_src>

<mosaic_0001>
module attributes {stable_mosaic.version = 11 : i64} {
  func.func @kernel(%arg0: i32, %arg1: memref<32x256xf32, #tpu.memory_space<vmem>>, %arg2: memref<80x32xf32, #tpu.memory_space<vmem>>, %arg3: memref<16x1xf32, #tpu.memory_space<vmem>>, %arg4: memref<16x256xf32, #tpu.memory_space<vmem>>) attributes {dimension_semantics = [#tpu.dimension_semantics<parallel>], iteration_bounds = array<i64: 1>, scalar_prefetch = 0 : i64, scratch_operands = 0 : i64, tpu.core_type = #tpu.core_type<tc>, window_params = [{transform_indices = @transform_0, window_bounds = array<i64: 32, 256>}, {pipeline_mode = #tpu.pipeline_mode<synchronous>, transform_indices = @transform_1, window_bounds = array<i64: 80, 32>}, {pipeline_mode = #tpu.pipeline_mode<synchronous>, transform_indices = @transform_2, window_bounds = array<i64: 16, 1>}, {transform_indices = @transform_3, window_bounds = array<i64: 16, 256>}]} {
    %c0 = arith.constant 0 : index
    %c0_0 = arith.constant 0 : index
    %0 = vector.load %arg2[%c0, %c0_0] : memref<80x32xf32, #tpu.memory_space<vmem>>, vector<80x32xf32>
    %c0_1 = arith.constant 0 : index
    %c0_2 = arith.constant 0 : index
    %1 = vector.load %arg1[%c0_1, %c0_2] : memref<32x256xf32, #tpu.memory_space<vmem>>, vector<32x256xf32>
    %cst = arith.constant dense<0.000000e+00> : vector<80x256xf32>
    %2 = tpu.matmul %0, %1, %cst {dimension_numbers = #tpu.dot_dimension_numbers<[1], [0], [0], [1], [0, 0, 1, 1], [], []>} : vector<80x32xf32>, vector<32x256xf32>, vector<80x256xf32> -> vector<80x256xf32>
    %3 = tpu.iota {dimensions = array<i32: 1>} : vector<1x256xi32>
    %c32_i32 = arith.constant 32 : i32
    %c0_i32 = arith.constant 0 : i32
    %4 = arith.cmpi eq, %c32_i32, %c0_i32 : i32
    %c1_i32 = arith.constant 1 : i32
    %5 = arith.select %4, %c1_i32, %c32_i32 : i32
    %6 = vector.broadcast %5 : i32 to vector<1x256xi32>
    %7 = arith.remsi %3, %6 : vector<1x256xi32>
    %c0_i32_3 = arith.constant 0 : i32
    %8 = vector.broadcast %c0_i32_3 : i32 to vector<1x256xi32>
    %9 = arith.cmpi ne, %7, %8 : vector<1x256xi32>
    %c0_i32_4 = arith.constant 0 : i32
    %10 = vector.broadcast %c0_i32_4 : i32 to vector<1x256xi32>
    %11 = arith.cmpi slt, %7, %10 : vector<1x256xi32>
    %c0_i32_5 = arith.constant 0 : i32
    %12 = arith.cmpi slt, %5, %c0_i32_5 : i32
    %13 = vector.broadcast %12 : i1 to vector<1x256xi1>
    %14 = vector.broadcast %13 : vector<1x256xi1> to vector<1x256xi1>
    %15 = arith.xori %11, %14 : vector<1x256xi1>
    %16 = arith.andi %15, %9 : vector<1x256xi1>
    %17 = vector.broadcast %5 : i32 to vector<1x256xi32>
    %18 = arith.addi %7, %17 : vector<1x256xi32>
    %19 = arith.select %16, %18, %7 : vector<1x256xi1>, vector<1x256xi32>
    %20 = vector.extract_strided_slice %2 {offsets = [32, 0], sizes = [16, 256], strides = [1, 1]} : vector<80x256xf32> to vector<16x256xf32>
    %21 = vector.extract_strided_slice %2 {offsets = [0, 0], sizes = [16, 256], strides = [1, 1]} : vector<80x256xf32> to vector<16x256xf32>
    %c2_i32 = arith.constant 2 : i32
    %22 = tpu.dynamic_rotate %21 by %c2_i32 dim 1 : vector<16x256xf32>, i32 -> vector<16x256xf32>
    %c-2_i32 = arith.constant -2 : i32
    %23 = vector.broadcast %c-2_i32 : i32 to vector<1x256xi32>
    %24 = arith.addi %19, %23 : vector<1x256xi32>
    %c0_i32_6 = arith.constant 0 : i32
    %25 = vector.broadcast %c0_i32_6 : i32 to vector<1x256xi32>
    %26 = arith.cmpi sge, %24, %25 : vector<1x256xi32>
    %c-2_i32_7 = arith.constant -2 : i32
    %27 = vector.broadcast %c-2_i32_7 : i32 to vector<1x256xi32>
    %28 = arith.addi %19, %27 : vector<1x256xi32>
    %c32_i32_8 = arith.constant 32 : i32
    %29 = vector.broadcast %c32_i32_8 : i32 to vector<1x256xi32>
    %30 = arith.cmpi slt, %28, %29 : vector<1x256xi32>
    %31 = arith.andi %26, %30 : vector<1x256xi1>
    %cst_9 = arith.constant 0.000000e+00 : f32
    %32 = vector.shape_cast %31 : vector<1x256xi1> to vector<1x256xi1>
    %33 = vector.broadcast %32 : vector<1x256xi1> to vector<16x256xi1>
    %34 = vector.broadcast %cst_9 : f32 to vector<16x256xf32>
    %35 = arith.select %33, %22, %34 : vector<16x256xi1>, vector<16x256xf32>
    %36 = arith.addf %20, %35 : vector<16x256xf32>
    %37 = vector.extract_strided_slice %2 {offsets = [16, 0], sizes = [16, 256], strides = [1, 1]} : vector<80x256xf32> to vector<16x256xf32>
    %c1_i32_10 = arith.constant 1 : i32
    %38 = tpu.dynamic_rotate %37 by %c1_i32_10 dim 1 : vector<16x256xf32>, i32 -> vector<16x256xf32>
    %c-1_i32 = arith.constant -1 : i32
    %39 = vector.broadcast %c-1_i32 : i32 to vector<1x256xi32>
    %40 = arith.addi %19, %39 : vector<1x256xi32>
    %c0_i32_11 = arith.constant 0 : i32
    %41 = vector.broadcast %c0_i32_11 : i32 to vector<1x256xi32>
    %42 = arith.cmpi sge, %40, %41 : vector<1x256xi32>
    %c-1_i32_12 = arith.constant -1 : i32
    %43 = vector.broadcast %c-1_i32_12 : i32 to vector<1x256xi32>
    %44 = arith.addi %19, %43 : vector<1x256xi32>
    %c32_i32_13 = arith.constant 32 : i32
    %45 = vector.broadcast %c32_i32_13 : i32 to vector<1x256xi32>
    %46 = arith.cmpi slt, %44, %45 : vector<1x256xi32>
    %47 = arith.andi %42, %46 : vector<1x256xi1>
    %cst_14 = arith.constant 0.000000e+00 : f32
    %48 = vector.shape_cast %47 : vector<1x256xi1> to vector<1x256xi1>
    %49 = vector.broadcast %48 : vector<1x256xi1> to vector<16x256xi1>
    %50 = vector.broadcast %cst_14 : f32 to vector<16x256xf32>
    %51 = arith.select %49, %38, %50 : vector<16x256xi1>, vector<16x256xf32>
    %52 = arith.addf %36, %51 : vector<16x256xf32>
    %53 = vector.extract_strided_slice %2 {offsets = [48, 0], sizes = [16, 256], strides = [1, 1]} : vector<80x256xf32> to vector<16x256xf32>
    %c255_i32 = arith.constant 255 : i32
    %54 = tpu.dynamic_rotate %53 by %c255_i32 dim 1 : vector<16x256xf32>, i32 -> vector<16x256xf32>
    %c1_i32_15 = arith.constant 1 : i32
    %55 = vector.broadcast %c1_i32_15 : i32 to vector<1x256xi32>
    %56 = arith.addi %19, %55 : vector<1x256xi32>
    %c0_i32_16 = arith.constant 0 : i32
    %57 = vector.broadcast %c0_i32_16 : i32 to vector<1x256xi32>
    %58 = arith.cmpi sge, %56, %57 : vector<1x256xi32>
    %c1_i32_17 = arith.constant 1 : i32
    %59 = vector.broadcast %c1_i32_17 : i32 to vector<1x256xi32>
    %60 = arith.addi %19, %59 : vector<1x256xi32>
    %c32_i32_18 = arith.constant 32 : i32
    %61 = vector.broadcast %c32_i32_18 : i32 to vector<1x256xi32>
    %62 = arith.cmpi slt, %60, %61 : vector<1x256xi32>
    %63 = arith.andi %58, %62 : vector<1x256xi1>
    %cst_19 = arith.constant 0.000000e+00 : f32
    %64 = vector.shape_cast %63 : vector<1x256xi1> to vector<1x256xi1>
    %65 = vector.broadcast %64 : vector<1x256xi1> to vector<16x256xi1>
    %66 = vector.broadcast %cst_19 : f32 to vector<16x256xf32>
    %67 = arith.select %65, %54, %66 : vector<16x256xi1>, vector<16x256xf32>
    %68 = arith.addf %52, %67 : vector<16x256xf32>
    %69 = vector.extract_strided_slice %2 {offsets = [64, 0], sizes = [16, 256], strides = [1, 1]} : vector<80x256xf32> to vector<16x256xf32>
    %c254_i32 = arith.constant 254 : i32
    %70 = tpu.dynamic_rotate %69 by %c254_i32 dim 1 : vector<16x256xf32>, i32 -> vector<16x256xf32>
    %c2_i32_20 = arith.constant 2 : i32
    %71 = vector.broadcast %c2_i32_20 : i32 to vector<1x256xi32>
    %72 = arith.addi %19, %71 : vector<1x256xi32>
    %c0_i32_21 = arith.constant 0 : i32
    %73 = vector.broadcast %c0_i32_21 : i32 to vector<1x256xi32>
    %74 = arith.cmpi sge, %72, %73 : vector<1x256xi32>
    %c2_i32_22 = arith.constant 2 : i32
    %75 = vector.broadcast %c2_i32_22 : i32 to vector<1x256xi32>
    %76 = arith.addi %19, %75 : vector<1x256xi32>
    %c32_i32_23 = arith.constant 32 : i32
    %77 = vector.broadcast %c32_i32_23 : i32 to vector<1x256xi32>
    %78 = arith.cmpi slt, %76, %77 : vector<1x256xi32>
    %79 = arith.andi %74, %78 : vector<1x256xi1>
    %cst_24 = arith.constant 0.000000e+00 : f32
    %80 = vector.shape_cast %79 : vector<1x256xi1> to vector<1x256xi1>
    %81 = vector.broadcast %80 : vector<1x256xi1> to vector<16x256xi1>
    %82 = vector.broadcast %cst_24 : f32 to vector<16x256xf32>
    %83 = arith.select %81, %70, %82 : vector<16x256xi1>, vector<16x256xf32>
    %84 = arith.addf %68, %83 : vector<16x256xf32>
    %c0_25 = arith.constant 0 : index
    %c0_26 = arith.constant 0 : index
    %85 = vector.load %arg3[%c0_25, %c0_26] : memref<16x1xf32, #tpu.memory_space<vmem>>, vector<16x1xf32>
    %86 = vector.broadcast %85 : vector<16x1xf32> to vector<16x256xf32>
    %87 = arith.addf %84, %86 : vector<16x256xf32>
    %cst_27 = arith.constant 0.000000e+00 : f32
    %88 = vector.broadcast %cst_27 : f32 to vector<16x256xf32>
    %89 = arith.maximumf %87, %88 : vector<16x256xf32>
    %c0_28 = arith.constant 0 : index
    %c0_29 = arith.constant 0 : index
    %90 = vector.load %arg4[%c0_28, %c0_29] : memref<16x256xf32, #tpu.memory_space<vmem>>, vector<16x256xf32>
    tpu.vector_store %arg4[%c0_28, %c0_29], %89 {strides = array<i32>} : memref<16x256xf32, #tpu.memory_space<vmem>>, vector<16x256xf32>,
    return
  }
  func.func @transform_0(%arg0: i32) -> (i32, i32) {
    %c0_i32 = arith.constant 0 : i32
    %c0_i32_0 = arith.constant 0 : i32
    return %c0_i32, %arg0 : i32, i32
  }
  func.func @transform_1(%arg0: i32) -> (i32, i32) {
    %c0_i32 = arith.constant 0 : i32
    %c0_i32_0 = arith.constant 0 : i32
    %c0_i32_1 = arith.constant 0 : i32
    return %c0_i32, %c0_i32_0 : i32, i32
  }
  func.func @transform_2(%arg0: i32) -> (i32, i32) {
    %c0_i32 = arith.constant 0 : i32
    %c0_i32_0 = arith.constant 0 : i32
    %c0_i32_1 = arith.constant 0 : i32
    return %c0_i32, %c0_i32_0 : i32, i32
  }
  func.func @transform_3(%arg0: i32) -> (i32, i32) {
    %c0_i32 = arith.constant 0 : i32
    %c0_i32_0 = arith.constant 0 : i32
    return %c0_i32, %arg0 : i32, i32
  }
}

</mosaic_0001>

<llo_original>
// kernel: tpu_custom_call.1
$region0: #{tpu_custom_call.1}
  #allocation0 [shape = 'u32[]', space=smem, size = 0x4, offset = 0x4, fixed_abs, tag = 'smem constant byte address 0x4 - core index']
  #allocation1 [shape = 'u32[144,128]{1,0:T(1,128)}', space=vmem, size = 0x12000, scoped, tag = 'internal scratch']
  %s0 = inlined_call_operand.vmem [shape: f32[32,256], index: 0, kind: input, shape index: {}]
  %s1 = inlined_call_operand.vmem [shape: f32[80,32], index: 1, kind: input, shape index: {}]
  %s2 = inlined_call_operand.vmem [shape: f32[16,1], index: 2, kind: input, shape index: {}]
  %s3 = inlined_call_operand.hbm [shape: f32[16,256], index: 3, kind: output, shape index: {}]
  %s4 = sld [smem:[#allocation0]]
  $region22: #{tpu_custom_call.1} parent=0
    _
  %s6 = ssub.s32 1, %s4
  %s7 = scalar_select 0, %s6, %s4
  $region1: #{tpu_custom_call.1} parent=0
    #allocation2 [shape = 'u8[16384]{0}', space=vmem, size = 0x4000, scoped, tag = 'output window, operand 0, single buffered']
    #allocation3 [shape = 's32[1]{0}', space=sflag, size = 0x4, scoped, tag = 'scoped memory for tpu_custom_call.1']
    %8 = vsyncpa [#allocation3], 0
    // Predicated region
    $region2: #{tpu_custom_call.1} parent=1 // pred_check
      _
    $region3: #{tpu_custom_call.1} parent=1 // pred_check_branch
      %10 = sbr.rel (0) target = $region5
    $region4: #{tpu_custom_call.1} parent=1 // pred_region
      _
    $region5: #{tpu_custom_call.1} parent=1 // pred_fallthru
      _
    // Predicated region
    $region6: #{tpu_custom_call.1} parent=1 // pred_check
      _
    $region7: #{tpu_custom_call.1} parent=1 // pred_check_branch
      %12 = sbr.rel (0) target = $region9
    $region8: #{tpu_custom_call.1} parent=1 // pred_region
      _
    $region9: #{tpu_custom_call.1} parent=1 // pred_fallthru
      _
    // Predicated region
    $region10: #{tpu_custom_call.1} parent=1 // pred_check
      _
    $region11: #{tpu_custom_call.1} parent=1 // pred_check_branch
      %14 = sbr.rel (0) target = $region13
    $region12: #{tpu_custom_call.1} parent=1 // pred_region
      _
    $region13: #{tpu_custom_call.1} parent=1 // pred_fallthru
      _
    %v15 = vld [vmem:[%s1] sm:$0xff]
    %v16 = vld [vmem:[%s1 + $0x8] sm:$0xff]
    %v17 = vld [vmem:[%s1 + $0x10] sm:$0xff]
    %v18 = vld [vmem:[%s1 + $0x18] sm:$0xff]
    %v19 = vld [vmem:[%s1 + $0x20] sm:$0xff]
    %v20 = vld [vmem:[%s1 + $0x28] sm:$0xff]
    %v21 = vld [vmem:[%s1 + $0x30] sm:$0xff]
    %v22 = vld [vmem:[%s1 + $0x38] sm:$0xff]
    %v23 = vld [vmem:[%s1 + $0x40] sm:$0xff]
    %v24 = vld [vmem:[%s1 + $0x48] sm:$0xff]
    %v25 = vld [vmem:[%s0] sm:$0xff]
    %v26 = vld [vmem:[%s0 + $0x8] sm:$0xff]
    %v27 = vld [vmem:[%s0 + $0x10] sm:$0xff]
    %v28 = vld [vmem:[%s0 + $0x18] sm:$0xff]
    %v29 = vld [vmem:[%s0 + $0x20] sm:$0xff]
    %v30 = vld [vmem:[%s0 + $0x28] sm:$0xff]
    %v31 = vld [vmem:[%s0 + $0x30] sm:$0xff]
    %v32 = vld [vmem:[%s0 + $0x38] sm:$0xff]
    %vm33 = vcmask 261120
    %v35 = vsel %vm33, %v15, 0
    %v38 = vsel %vm33, %v16, 0
    %v41 = vsel %vm33, %v17, 0
    %v44 = vsel %vm33, %v18, 0
    %v47 = vsel %vm33, %v19, 0
    %v50 = vsel %vm33, %v20, 0
    %v53 = vsel %vm33, %v21, 0
    %v56 = vsel %vm33, %v22, 0
    %v59 = vsel %vm33, %v23, 0
    %v62 = vsel %vm33, %v24, 0
    %64 = vmatprep.subr.mxu0 %v26
    %65 = vmatpush1.msra.mxu0 %v25
    %66 = vmatprep.subr.mxu0 %v28
    %67 = vmatpush1.msra.mxu0 %v27
    %68 = vmatprep.subr.mxu0 %v30
    %69 = vmatpush1.msra.mxu0 %v29
    %70 = vmatprep.subr.mxu0 %v32
    %71 = vmatpush1.msra.mxu0 %v31
    %72 = vmatprep.subr.mxu0 0.0
    %73 = vmatpush1.msra.mxu0 0.0
    %74 = vmatprep.subr.mxu0 0.0
    %75 = vmatpush1.msra.mxu0 0.0
    %76 = vmatprep.subr.mxu0 0.0
    %77 = vmatpush1.msra.mxu0 0.0
    %78 = vmatprep.subr.mxu0 0.0
    %79 = vmatpush1.msra.mxu0 0.0
    %80 = vmatprep.subr.mxu0 0.0
    %81 = vmatpush1.msra.mxu0 0.0
    %82 = vmatprep.subr.mxu0 0.0
    %83 = vmatpush1.msra.mxu0 0.0
    %84 = vmatprep.subr.mxu0 0.0
    %85 = vmatpush1.msra.mxu0 0.0
    %86 = vmatprep.subr.mxu0 0.0
    %87 = vmatpush1.msra.mxu0 0.0
    %88 = vmatprep.subr.mxu0 0.0
    %89 = vmatpush1.msra.mxu0 0.0
    %90 = vmatprep.subr.mxu0 0.0
    %91 = vmatpush1.msra.mxu0 0.0
    %92 = vmatprep.subr.mxu0 0.0
    %93 = vmatpush1.msra.mxu0 0.0
    %94 = vmatprep.subr.mxu0 0.0
    %95 = vmatpush1.msra.mxu0 0.0
    %96 = vmatprep.subr.mxu0 0.0
    %97 = vmatpush1.msra.mxu0 0.0
    %98 = vmatprep.subr.mxu0 0.0
    %99 = vmatpush1.msra.mxu0 0.0
    %100 = vmatprep.subr.mxu0 0.0
    %101 = vmatpush1.msra.mxu0 0.0
    %102 = vmatprep.subr.mxu0 0.0
    %103 = vmatpush1.msra.mxu0 0.0
    %104 = vmatprep.subr.mxu0 0.0
    %105 = vmatpush1.msra.mxu0 0.0
    %106 = vmatprep.subr.mxu0 0.0
    %107 = vmatpush1.msra.mxu0 0.0
    %108 = vmatprep.subr.mxu0 0.0
    %109 = vmatpush1.msra.mxu0 0.0
    %110 = vmatprep.subr.mxu0 0.0
    %111 = vmatpush1.msra.mxu0 0.0
    %112 = vmatprep.subr.mxu0 0.0
    %113 = vmatpush1.msra.mxu0 0.0
    %114 = vmatprep.subr.mxu0 0.0
    %115 = vmatpush1.msra.mxu0 0.0
    %116 = vmatprep.subr.mxu0 0.0
    %117 = vmatpush1.msra.mxu0 0.0
    %118 = vmatprep.subr.mxu0 0.0
    %119 = vmatpush1.msra.mxu0 0.0
    %120 = vmatprep.subr.mxu0 0.0
    %121 = vmatpush1.msra.mxu0 0.0
    %122 = vmatprep.subr.mxu0 0.0
    %123 = vmatpush1.msra.mxu0 0.0
    %124 = vmatprep.subr.mxu0 0.0
    %125 = vmatpush1.msra.mxu0 0.0
    %126 = vmatprep.subr.mxu0 0.0
    %127 = vmatpush1.msra.mxu0 0.0
    %128 = vmatprep.mubr.f32.mxu0 0.0
    %129 = vmatmul.mubr.f32.gmra.mrb[0].mxu0 %v35
    %v130 = vpop.f32.mrb[0].mxu0
    %v131 = vadd.f32 0.0, %v130
    %v132 = vpop.f32.mrb[0].mxu0
    %v133 = vadd.f32 0.0, %v132
    %134 = vmatprep.mubr.f32.mxu0 0.0
    %135 = vmatmul.mubr.f32.gmra.mrb[0].mxu0 %v38
    %v136 = vpop.f32.mrb[0].mxu0
    %v137 = vadd.f32 0.0, %v136
    %v138 = vpop.f32.mrb[0].mxu0
    %v139 = vadd.f32 0.0, %v138
    %140 = vmatprep.mubr.f32.mxu0 0.0
    %141 = vmatmul.mubr.f32.gmra.mrb[0].mxu0 %v41
    %v142 = vpop.f32.mrb[0].mxu0
    %v143 = vadd.f32 0.0, %v142
    %v144 = vpop.f32.mrb[0].mxu0
    %v145 = vadd.f32 0.0, %v144
    %146 = vmatprep.mubr.f32.mxu0 0.0
    %147 = vmatmul.mubr.f32.gmra.mrb[0].mxu0 %v44
    %v148 = vpop.f32.mrb[0].mxu0
    %v149 = vadd.f32 0.0, %v148
    %v150 = vpop.f32.mrb[0].mxu0
    %v151 = vadd.f32 0.0, %v150
    %152 = vmatprep.mubr.f32.mxu0 0.0
    %153 = vmatmul.mubr.f32.gmra.mrb[0].mxu0 %v47
    %v154 = vpop.f32.mrb[0].mxu0
    %v155 = vadd.f32 0.0, %v154
    %v156 = vpop.f32.mrb[0].mxu0
    %v157 = vadd.f32 0.0, %v156
    %158 = vmatprep.mubr.f32.mxu0 0.0
    %159 = vmatmul.mubr.f32.gmra.mrb[0].mxu0 %v50
    %v160 = vpop.f32.mrb[0].mxu0
    %v161 = vadd.f32 0.0, %v160
    %v162 = vpop.f32.mrb[0].mxu0
    %v163 = vadd.f32 0.0, %v162
    %164 = vmatprep.mubr.f32.mxu0 0.0
    %165 = vmatmul.mubr.f32.gmra.mrb[0].mxu0 %v53
    %v166 = vpop.f32.mrb[0].mxu0
    %v167 = vadd.f32 0.0, %v166
    %v168 = vpop.f32.mrb[0].mxu0
    %v169 = vadd.f32 0.0, %v168
    %170 = vmatprep.mubr.f32.mxu0 0.0
    %171 = vmatmul.mubr.f32.gmra.mrb[0].mxu0 %v56
    %v172 = vpop.f32.mrb[0].mxu0
    %v173 = vadd.f32 0.0, %v172
    %v174 = vpop.f32.mrb[0].mxu0
    %v175 = vadd.f32 0.0, %v174
    %176 = vmatprep.mubr.f32.mxu0 0.0
    %177 = vmatmul.mubr.f32.gmra.mrb[0].mxu0 %v59
    %v178 = vpop.f32.mrb[0].mxu0
    %v179 = vadd.f32 0.0, %v178
    %v180 = vpop.f32.mrb[0].mxu0
    %v181 = vadd.f32 0.0, %v180
    %182 = vmatprep.mubr.f32.mxu0 0.0
    %183 = vmatmul.mubr.f32.gmra.mrb[0].mxu0 %v62
    %v184 = vpop.f32.mrb[0].mxu0
    %v185 = vadd.f32 0.0, %v184
    %v186 = vpop.f32.mrb[0].mxu0
    %v187 = vadd.f32 0.0, %v186
    %188 = vdwg.mxu0
    %v189 = vlaneseq
    %v190 = vand.u32 %v189, 127
    %v191 = vadd.s32 %v190, 128
    %vm192 = vcmp.lt.s32.totalorder %v190, 0
    %v193 = vsub.s32 0, %v190
    %v194 = vsel %vm192, %v193, %v190
    %v195 = vshrl.u32 %v194, 5
    %v196 = vand.u32 %v194, 31
    %v197 = vsub.s32 0, %v196
    %v198 = vsel %vm192, %v197, %v196
    %vm199 = vcmp.lt.s32.totalorder %v191, 0
    %v200 = vsub.s32 0, %v191
    %v201 = vsel %vm199, %v200, %v191
    %v202 = vshrl.u32 %v201, 5
    %v203 = vand.u32 %v201, 31
    %v204 = vsub.s32 0, %v203
    %v205 = vsel %vm199, %v204, %v203
    %vm206 = vcmp.ne.s32.totalorder %v198, 0
    %vm207 = vcmp.ne.s32.totalorder %v205, 0
    %vm208 = vcmp.lt.s32.totalorder %v198, 0
    %vm209 = vcmp.lt.s32.totalorder %v205, 0
    %vm210 = vmand %vm208, %vm206
    %vm211 = vmand %vm209, %vm207
    %v212 = vadd.s32 %v198, 32
    %v213 = vadd.s32 %v205, 32
    %v214 = vsel %vm210, %v212, %v198
    %v215 = vsel %vm211, %v213, %v205
    %216 = vrot.lane.b32.xlu0 %v131, 2
    %v217 = vpop.permute.xlu0 %216
    %218 = vrot.lane.b32.xlu0 %v137, 2
    %v219 = vpop.permute.xlu0 %218
    %220 = vrot.lane.b32.xlu0 %v133, 2
    %v221 = vpop.permute.xlu0 %220
    %222 = vrot.lane.b32.xlu0 %v139, 2
    %v223 = vpop.permute.xlu0 %222
    %vm224 = vcmp.lt.s32.totalorder %v190, 2
    %v225 = vsel %vm224, %v217, %v221
    %v226 = vsel %vm224, %v219, %v223
    %v227 = vsel %vm224, %v221, %v217
    %v228 = vsel %vm224, %v223, %v219
    %v229 = vadd.s32 %v214, 4294967294
    %v230 = vadd.s32 %v215, 4294967294
    %vm231 = vcmp.ge.s32.totalorder %v229, 0
    %vm232 = vcmp.ge.s32.totalorder %v230, 0
    %vm233 = vcmp.lt.s32.totalorder %v229, 32
    %vm234 = vcmp.lt.s32.totalorder %v230, 32
    %vm235 = vmand %vm231, %vm233
    %vm236 = vmand %vm232, %vm234
    %v237 = vsel %vm235, 1, 0
    %v238 = vsel %vm236, 1, 0
    %vm239 = vcmp.eq.s32.totalorder %v237, 1
    %vm240 = vcmp.eq.s32.totalorder %v238, 1
    %v241 = vsel %vm239, %v227, 0.0
    %v242 = vsel %vm240, %v225, 0.0
    %v243 = vsel %vm239, %v228, 0.0
    %v244 = vsel %vm240, %v226, 0.0
    %v245 = vadd.f32 %v155, %v241
    %v246 = vadd.f32 %v157, %v242
    %v247 = vadd.f32 %v161, %v243
    %v248 = vadd.f32 %v163, %v244
    %249 = vrot.lane.b32.xlu0 %v143, 1
    %v250 = vpop.permute.xlu0 %249
    %251 = vrot.lane.b32.xlu0 %v149, 1
    %v252 = vpop.permute.xlu0 %251
    %253 = vrot.lane.b32.xlu0 %v145, 1
    %v254 = vpop.permute.xlu0 %253
    %255 = vrot.lane.b32.xlu0 %v151, 1
    %v256 = vpop.permute.xlu0 %255
    %vm257 = vcmp.lt.s32.totalorder %v190, 1
    %v258 = vsel %vm257, %v250, %v254
    %v259 = vsel %vm257, %v252, %v256
    %v260 = vsel %vm257, %v254, %v250
    %v261 = vsel %vm257, %v256, %v252
    %v262 = vadd.s32 %v214, 4294967295
    %v263 = vadd.s32 %v215, 4294967295
    %vm264 = vcmp.ge.s32.totalorder %v262, 0
    %vm265 = vcmp.ge.s32.totalorder %v263, 0
    %vm266 = vcmp.lt.s32.totalorder %v262, 32
    %vm267 = vcmp.lt.s32.totalorder %v263, 32
    %vm268 = vmand %vm264, %vm266
    %vm269 = vmand %vm265, %vm267
    %v270 = vsel %vm268, 1, 0
    %v271 = vsel %vm269, 1, 0
    %vm272 = vcmp.eq.s32.totalorder %v270, 1
    %vm273 = vcmp.eq.s32.totalorder %v271, 1
    %v274 = vsel %vm272, %v260, 0.0
    %v275 = vsel %vm273, %v258, 0.0
    %v276 = vsel %vm272, %v261, 0.0
    %v277 = vsel %vm273, %v259, 0.0
    %v278 = vadd.f32 %v245, %v274
    %v279 = vadd.f32 %v246, %v275
    %v280 = vadd.f32 %v247, %v276
    %v281 = vadd.f32 %v248, %v277
    %282 = vrot.lane.b32.xlu0 %v167, 127
    %v283 = vpop.permute.xlu0 %282
    %284 = vrot.lane.b32.xlu0 %v173, 127
    %v285 = vpop.permute.xlu0 %284
    %286 = vrot.lane.b32.xlu0 %v169, 127
    %v287 = vpop.permute.xlu0 %286
    %288 = vrot.lane.b32.xlu0 %v175, 127
    %v289 = vpop.permute.xlu0 %288
    %vm290 = vcmp.lt.s32.totalorder %v190, 127
    %v291 = vsel %vm290, %v283, %v287
    %v292 = vsel %vm290, %v285, %v289
    %v293 = vsel %vm290, %v287, %v283
    %v294 = vsel %vm290, %v289, %v285
    %v295 = vadd.s32 %v214, 1
    %v296 = vadd.s32 %v215, 1
    %vm297 = vcmp.ge.s32.totalorder %v295, 0
    %vm298 = vcmp.ge.s32.totalorder %v296, 0
    %vm299 = vcmp.lt.s32.totalorder %v295, 32
    %vm300 = vcmp.lt.s32.totalorder %v296, 32
    %vm301 = vmand %vm297, %vm299
    %vm302 = vmand %vm298, %vm300
    %v303 = vsel %vm301, 1, 0
    %v304 = vsel %vm302, 1, 0
    %vm305 = vcmp.eq.s32.totalorder %v303, 1
    %vm306 = vcmp.eq.s32.totalorder %v304, 1
    %v307 = vsel %vm305, %v291, 0.0
    %v308 = vsel %vm306, %v293, 0.0
    %v309 = vsel %vm305, %v292, 0.0
    %v310 = vsel %vm306, %v294, 0.0
    %v311 = vadd.f32 %v278, %v307
    %v312 = vadd.f32 %v279, %v308
    %v313 = vadd.f32 %v280, %v309
    %v314 = vadd.f32 %v281, %v310
    %315 = vrot.lane.b32.xlu0 %v179, 126
    %v316 = vpop.permute.xlu0 %315
    %317 = vrot.lane.b32.xlu0 %v185, 126
    %v318 = vpop.permute.xlu0 %317
    %319 = vrot.lane.b32.xlu0 %v181, 126
    %v320 = vpop.permute.xlu0 %319
    %321 = vrot.lane.b32.xlu0 %v187, 126
    %v322 = vpop.permute.xlu0 %321
    %vm323 = vcmp.lt.s32.totalorder %v190, 126
    %v324 = vsel %vm323, %v316, %v320
    %v325 = vsel %vm323, %v318, %v322
    %v326 = vsel %vm323, %v320, %v316
    %v327 = vsel %vm323, %v322, %v318
    %v328 = vadd.s32 %v214, 2
    %v329 = vadd.s32 %v215, 2
    %vm330 = vcmp.ge.s32.totalorder %v328, 0
    %vm331 = vcmp.ge.s32.totalorder %v329, 0
    %vm332 = vcmp.lt.s32.totalorder %v328, 32
    %vm333 = vcmp.lt.s32.totalorder %v329, 32
    %vm334 = vmand %vm330, %vm332
    %vm335 = vmand %vm331, %vm333
    %v336 = vsel %vm334, 1, 0
    %v337 = vsel %vm335, 1, 0
    %vm338 = vcmp.eq.s32.totalorder %v336, 1
    %vm339 = vcmp.eq.s32.totalorder %v337, 1
    %v340 = vsel %vm338, %v324, 0.0
    %v341 = vsel %vm339, %v326, 0.0
    %v342 = vsel %vm338, %v325, 0.0
    %v343 = vsel %vm339, %v327, 0.0
    %v344 = vadd.f32 %v311, %v340
    %v345 = vadd.f32 %v312, %v341
    %v346 = vadd.f32 %v313, %v342
    %v347 = vadd.f32 %v314, %v343
    %v348 = vld [vmem:[%s2] sm:$0xff]
    %v349 = vld [vmem:[%s2 + $0x8] sm:$0xff]
    %351 = vset.pattern.permute.xlu0 0
    %352 = vperm.xlu0 %351, %v348
    %v353 = vpop.permute.xlu0 %352
    %356 = vset.pattern.permute.xlu0 0
    %357 = vperm.xlu0 %356, %v349
    %v358 = vpop.permute.xlu0 %357
    %v360 = vadd.f32 %v344, %v353
    %v361 = vadd.f32 %v345, %v353
    %v362 = vadd.f32 %v346, %v358
    %v363 = vadd.f32 %v347, %v358
    %v364 = vmax.f32 %v360, 0.0
    %v365 = vmax.f32 %v361, 0.0
    %v366 = vmax.f32 %v362, 0.0
    %v367 = vmax.f32 %v363, 0.0
    %368 = vst [vmem:[#allocation2] sm:$0xff] %v364
    %369 = vst [vmem:[#allocation2 + $0x8] sm:$0xff] %v365
    %370 = vst [vmem:[#allocation2 + $0x10] sm:$0xff] %v366
    %371 = vst [vmem:[#allocation2 + $0x18] sm:$0xff] %v367
    // Predicated region
    $region14: #{tpu_custom_call.1} parent=1 // pred_check
      _
    $region15: #{tpu_custom_call.1} parent=1 // pred_check_branch
      %373 = sbr.rel (0) target = $region17
    $region16: #{tpu_custom_call.1} parent=1 // pred_region
      %s375 = ssub.s32 512, 512
      %376 = vsyncadd [#allocation3], %s375
      %s377 = sshll.u32 [#allocation2], 4
      %s378 = int_to_ptr.vmem [resolvable:$true] %s377
      %383 = dma.vmem_to_hbm [thread:$0]  %s378, 512, %s3, [#allocation3], 256, 256, 16
    $region17: #{tpu_custom_call.1} parent=1 // pred_fallthru
      _
    // Predicated region
    $region18: #{tpu_custom_call.1} parent=1 // pred_check
      _
    $region19: #{tpu_custom_call.1} parent=1 // pred_check_branch
      %385 = sbr.rel (0) target = $region21
    $region20: #{tpu_custom_call.1} parent=1 // pred_region
      %386 = dma.done [#allocation3], 512
    $region21: #{tpu_custom_call.1} parent=1 // pred_fallthru
      _
    %387 = vsyncpa [#allocation3], 1

</llo_original>
